<compile_context>
chip_gen: v6e
topology: v6e:2x2x1
jax: 0.10.0
libtpu: 0.0.40
codegen_flags: <defaults>
</compile_context>

<pallas_src>
import functools

import jax
import jax.numpy as jnp
from jax.experimental import pallas as pl
from jax.experimental.pallas import tpu as pltpu


# ----------------------------------------------------------------------------
# helpers
# ----------------------------------------------------------------------------
def _round_up(x, m):
    return ((x + m - 1) // m) * m


def _pick_tile(hw):
    # Largest MXU/DMA-friendly tile that evenly divides the spatial extent.
    for tm in (2048, 1024, 512, 256, 128):
        if hw % tm == 0:
            return tm
    return hw  # tiny / odd maps: one full-extent tile


# ----------------------------------------------------------------------------
# fused forward kernel
# ----------------------------------------------------------------------------
def _fused_step_kernel(x_ref, wconv_ref, bconv_ref, wdense_ref, bdense_ref,
                       wfc_ref, bfc_ref, wsingle_ref, bsingle_ref,
                       dense_out_ref, single_out_ref, pooled_acc, *, inv_hw):
    """Grid = (batch, spatial_tile).  One batch element per outer step; the inner
    (spatial) axis is a reduction for the GAP accumulator, so it is 'arbitrary'."""
    j = pl.program_id(1)

    # ---- backbone dense branch: pointwise conv + ReLU on this row tile (MXU + VPU)
    x = x_ref[0]                                                     # (TM, Kpad)
    feat = jnp.dot(x, wconv_ref[...], preferred_element_type=jnp.float32)
    feat = jnp.maximum(feat + bconv_ref[...], 0.0)                   # (TM, Cdec)

    # ---- dense heads (concatenated + 128-lane padded N => unmasked lane-dense stores)
    y = jnp.dot(feat, wdense_ref[...], preferred_element_type=jnp.float32)
    dense_out_ref[0] = (y + bdense_ref[...]).astype(dense_out_ref.dtype)

    # ---- GAP partial sum (XLU cross-sublane reduce; accumulator lives in VMEM scratch)
    @pl.when(j == 0)
    def _():
        pooled_acc[...] = jnp.zeros_like(pooled_acc)

    pooled_acc[...] += jnp.sum(feat, axis=0, keepdims=True)          # (1, Cdec)

    # ---- finalize this batch element: fc + ReLU, then fused single heads
    @pl.when(j == pl.num_programs(1) - 1)
    def _():
        pooled = pooled_acc[...] * inv_hw                            # (1, Cdec)
        xs = jnp.dot(pooled, wfc_ref[...], preferred_element_type=jnp.float32)
        xs = jnp.maximum(xs + bfc_ref[...], 0.0)                     # (1, Dsingle)
        ys = jnp.dot(xs, wsingle_ref[...], preferred_element_type=jnp.float32)
        single_out_ref[0] = (ys + bsingle_ref[...]).astype(single_out_ref.dtype)


def _fused_forward_call(x_rows, packed, *, hw, tm, k_pad, cdec, dsingle,
                        n_dense_pad, n_single_pad):
    B = x_rows.shape[0]
    assert hw % tm == 0, (hw, tm)
    grid = (B, hw // tm)
    kernel = functools.partial(_fused_step_kernel, inv_hw=float(1.0 / hw))

    dense_out, single_out = pl.pallas_call(
        kernel,
        out_shape=(
            jax.ShapeDtypeStruct((B, hw, n_dense_pad), jnp.float32),
            jax.ShapeDtypeStruct((B, 1, n_single_pad), jnp.float32),
        ),
        grid_spec=pltpu.PrefetchScalarGridSpec(
            num_scalar_prefetch=0,
            grid=grid,
            in_specs=[
                pl.BlockSpec((1, tm, k_pad), lambda b, j: (b, j, 0)),       # x rows
                pl.BlockSpec((k_pad, cdec), lambda b, j: (0, 0)),           # conv W
                pl.BlockSpec((1, cdec), lambda b, j: (0, 0)),               # conv b
                pl.BlockSpec((cdec, n_dense_pad), lambda b, j: (0, 0)),     # dense-heads W
                pl.BlockSpec((1, n_dense_pad), lambda b, j: (0, 0)),        # dense-heads b
                pl.BlockSpec((cdec, dsingle), lambda b, j: (0, 0)),         # fc W
                pl.BlockSpec((1, dsingle), lambda b, j: (0, 0)),            # fc b
                pl.BlockSpec((dsingle, n_single_pad), lambda b, j: (0, 0)), # single-heads W
                pl.BlockSpec((1, n_single_pad), lambda b, j: (0, 0)),       # single-heads b
            ],
            out_specs=(
                pl.BlockSpec((1, tm, n_dense_pad), lambda b, j: (b, j, 0)),
                pl.BlockSpec((1, 1, n_single_pad), lambda b, j: (b, 0, 0)),
            ),
            scratch_shapes=[pltpu.VMEM((1, cdec), jnp.float32)],            # GAP accumulator
        ),
        compiler_params=pltpu.CompilerParams(
            dimension_semantics=("parallel", "arbitrary")),
    )(x_rows, packed["wconv"], packed["bconv"], packed["wdense"], packed["bdense"],
      packed["wfc"], packed["bfc"], packed["wsingle"], packed["bsingle"])
    return dense_out, single_out


# ----------------------------------------------------------------------------
# parameters: logical (per-head, matching the PyTorch container) + packed-for-kernel
# ----------------------------------------------------------------------------
def init_params(key, cin, decoder_channels, single_dim, dense_head_channels,
                single_head_dims):
    ks = jax.random.split(key, 4 + 2 * (len(dense_head_channels) + len(single_head_dims)))
    it = iter(ks)
    p = {}
    p["bb_conv_w"] = 0.1 * jax.random.normal(next(it), (cin, decoder_channels), jnp.float32)
    p["bb_conv_b"] = 0.1 * jax.random.normal(next(it), (decoder_channels,), jnp.float32)
    p["bb_fc_w"] = 0.1 * jax.random.normal(next(it), (decoder_channels, single_dim), jnp.float32)
    p["bb_fc_b"] = 0.1 * jax.random.normal(next(it), (single_dim,), jnp.float32)
    p["dense_heads"] = {}
    for name, out_ch in dense_head_channels.items():
        p["dense_heads"][name] = {
            "w": 0.1 * jax.random.normal(next(it), (decoder_channels, out_ch), jnp.float32),
            "b": 0.1 * jax.random.normal(next(it), (out_ch,), jnp.float32),
        }
    p["single_heads"] = {}
    for name, out_dim in single_head_dims.items():
        p["single_heads"][name] = {
            "w": 0.1 * jax.random.normal(next(it), (single_dim, out_dim), jnp.float32),
            "b": 0.1 * jax.random.normal(next(it), (out_dim,), jnp.float32),
        }
    return p


def pack_params(params, cin, decoder_channels, single_dim, dense_head_channels,
                single_head_dims):
    """One-time packing: pad K to a sublane multiple, concatenate head weights and
    zero-pad N to a 128-lane multiple; pre-shape biases to (1, N)."""
    k_pad = max(8, _round_up(cin, 8))
    n_dense = sum(dense_head_channels.values())
    n_single = sum(single_head_dims.values())
    n_dense_pad = max(128, _round_up(n_dense, 128))
    n_single_pad = max(128, _round_up(n_single, 128))

    wconv = jnp.zeros((k_pad, decoder_channels), jnp.float32)
    wconv = wconv.at[:cin, :].set(params["bb_conv_w"])
    bconv = params["bb_conv_b"].reshape(1, decoder_channels).astype(jnp.float32)

    # concatenate dense heads along N, record slices, pad to lane-dense width
    dense_slices, off = [], 0
    w_parts, b_parts = [], []
    for name, out_ch in dense_head_channels.items():
        dense_slices.append((name, off, out_ch))
        w_parts.append(params["dense_heads"][name]["w"])
        b_parts.append(params["dense_heads"][name]["b"])
        off += out_ch
    wdense = jnp.zeros((decoder_channels, n_dense_pad), jnp.float32)
    wdense = wdense.at[:, :n_dense].set(jnp.concatenate(w_parts, axis=1))
    bdense = jnp.zeros((1, n_dense_pad), jnp.float32)
    bdense = bdense.at[0, :n_dense].set(jnp.concatenate(b_parts, axis=0))

    wfc = params["bb_fc_w"].astype(jnp.float32)
    bfc = params["bb_fc_b"].reshape(1, single_dim).astype(jnp.float32)

    single_slices, off = [], 0
    w_parts, b_parts = [], []
    for name, out_dim in single_head_dims.items():
        single_slices.append((name, off, out_dim))
        w_parts.append(params["single_heads"][name]["w"])
        b_parts.append(params["single_heads"][name]["b"])
        off += out_dim
    wsingle = jnp.zeros((single_dim, n_single_pad), jnp.float32)
    wsingle = wsingle.at[:, :n_single].set(jnp.concatenate(w_parts, axis=1))
    bsingle = jnp.zeros((1, n_single_pad), jnp.float32)
    bsingle = bsingle.at[0, :n_single].set(jnp.concatenate(b_parts, axis=0))

    packed = dict(wconv=wconv, bconv=bconv, wdense=wdense, bdense=bdense,
                  wfc=wfc, bfc=bfc, wsingle=wsingle, bsingle=bsingle)
    meta = dict(cin=cin, k_pad=k_pad, cdec=decoder_channels, dsingle=single_dim,
                n_dense_pad=n_dense_pad, n_single_pad=n_single_pad,
                dense_slices=tuple(dense_slices), single_slices=tuple(single_slices))
    return packed, meta


# ----------------------------------------------------------------------------
# forward: one boundary layout conversion in, one fused pallas_call, slice outputs
# ----------------------------------------------------------------------------
def build_step_model_forward(meta, tm=None):
    @jax.jit
    def forward(packed, x_nchw):
        B, cin, H, W = x_nchw.shape
        assert cin == meta["cin"], (cin, meta["cin"])
        hw = H * W
        tile = tm if tm is not None else _pick_tile(hw)

        # single layout conversion + tiny channel pad at the boundary
        x_rows = jnp.transpose(x_nchw, (0, 2, 3, 1)).reshape(B, hw, cin)
        if meta["k_pad"] > cin:
            x_rows = jnp.pad(x_rows, ((0, 0), (0, 0), (0, meta["k_pad"] - cin)))
        x_rows = x_rows.astype(jnp.float32)

        dense_out, single_out = _fused_forward_call(
            x_rows, packed, hw=hw, tm=tile, k_pad=meta["k_pad"], cdec=meta["cdec"],
            dsingle=meta["dsingle"], n_dense_pad=meta["n_dense_pad"],
            n_single_pad=meta["n_single_pad"])
        single_out = single_out[:, 0, :]                      # (B, n_single_pad)

        outs = {}
        for name, start, ch in meta["dense_slices"]:
            y = dense_out[:, :, start:start + ch].reshape(B, H, W, ch)
            outs[name] = jnp.transpose(y, (0, 3, 1, 2))       # one NCHW transpose per output
        for name, start, ch in meta["single_slices"]:
            outs[name] = single_out[:, start:start + ch]
        return outs

    return forward


# ----------------------------------------------------------------------------
# pure-JAX reference (for correctness) and main
# ----------------------------------------------------------------------------
def reference_forward(params, x_nchw, dense_head_channels, single_head_dims):
    hp = jax.lax.Precision.HIGHEST
    B, cin, H, W = x_nchw.shape
    xr = jnp.transpose(x_nchw, (0, 2, 3, 1)).reshape(B, H * W, cin)
    feat = jax.nn.relu(
        jnp.einsum("bnc,cd->bnd", xr, params["bb_conv_w"], precision=hp)
        + params["bb_conv_b"])
    pooled = jnp.mean(feat, axis=1)
    xs = jax.nn.relu(jnp.dot(pooled, params["bb_fc_w"], precision=hp) + params["bb_fc_b"])
    out = {}
    for name in dense_head_channels:
        w = params["dense_heads"][name]["w"]; b = params["dense_heads"][name]["b"]
        y = jnp.einsum("bnd,de->bne", feat, w, precision=hp) + b
        out[name] = jnp.transpose(y.reshape(B, H, W, -1), (0, 3, 1, 2))
    for name in single_head_dims:
        w = params["single_heads"][name]["w"]; b = params["single_heads"][name]["b"]
        out[name] = jnp.dot(xs, w, precision=hp) + b
    return out


if __name__ == "__main__":
    B, Cin, H, W = 2, 4, 16, 16
    decoder_channels = 32
    single_dim = 32
    dense_head_channels = {"mask": 2, "class": 8}
    single_head_dims = {"mode": 6, "value": 1}

    key = jax.random.PRNGKey(0)
    k_x, k_p = jax.random.split(key)
    x = jax.random.normal(k_x, (B, Cin, H, W), jnp.float32)
    params = init_params(k_p, Cin, decoder_channels, single_dim,
                         dense_head_channels, single_head_dims)
    packed, meta = pack_params(params, Cin, decoder_channels, single_dim,
                               dense_head_channels, single_head_dims)

    # tm=128 -> 2 spatial tiles per batch element: exercises the GAP accumulation /
    # finalize path across grid steps (auto-pick would use a single 256-row tile here).
    forward = build_step_model_forward(meta, tm=128)
    out = jax.block_until_ready(forward(packed, x))

    # shape checks (match the PyTorch head-output layout)
    assert out["mask"].shape == (B, 2, H, W)
    assert out["class"].shape == (B, 8, H, W)
    assert out["mode"].shape == (B, 6)
    assert out["value"].shape == (B, 1)

    # numerical check vs pure-JAX reference
    ref = jax.block_until_ready(
        reference_forward(params, x, dense_head_channels, single_head_dims))
    for name in out:
        assert jnp.allclose(out[name], ref[name], atol=5e-4, rtol=5e-4), name

    print("KERNEL_OK")
</pallas_src>

<mosaic_0001>
module attributes {stable_mosaic.version = 11 : i64} {
  func.func @_fused_step_kernel(%arg0: i32, %arg1: i32, %arg2: memref<1x128x8xf32, #tpu.memory_space<vmem>>, %arg3: memref<8x32xf32, #tpu.memory_space<vmem>>, %arg4: memref<1x32xf32, #tpu.memory_space<vmem>>, %arg5: memref<32x128xf32, #tpu.memory_space<vmem>>, %arg6: memref<1x128xf32, #tpu.memory_space<vmem>>, %arg7: memref<32x32xf32, #tpu.memory_space<vmem>>, %arg8: memref<1x32xf32, #tpu.memory_space<vmem>>, %arg9: memref<32x128xf32, #tpu.memory_space<vmem>>, %arg10: memref<1x128xf32, #tpu.memory_space<vmem>>, %arg11: memref<1x128x128xf32, #tpu.memory_space<vmem>>, %arg12: memref<1x1x128xf32, #tpu.memory_space<vmem>>, %arg13: memref<1x32xf32, #tpu.memory_space<vmem>>) attributes {dimension_semantics = [#tpu.dimension_semantics<parallel>, #tpu.dimension_semantics<arbitrary>], iteration_bounds = array<i64: 2, 2>, scalar_prefetch = 0 : i64, scratch_operands = 1 : i64, tpu.core_type = #tpu.core_type<tc>, window_params = [{transform_indices = @transform_0, window_bounds = array<i64: 1, 128, 8>}, {pipeline_mode = #tpu.pipeline_mode<synchronous>, transform_indices = @transform_1, window_bounds = array<i64: 8, 32>}, {pipeline_mode = #tpu.pipeline_mode<synchronous>, transform_indices = @transform_2, window_bounds = array<i64: 1, 32>}, {pipeline_mode = #tpu.pipeline_mode<synchronous>, transform_indices = @transform_3, window_bounds = array<i64: 32, 128>}, {pipeline_mode = #tpu.pipeline_mode<synchronous>, transform_indices = @transform_4, window_bounds = array<i64: 1, 128>}, {pipeline_mode = #tpu.pipeline_mode<synchronous>, transform_indices = @transform_5, window_bounds = array<i64: 32, 32>}, {pipeline_mode = #tpu.pipeline_mode<synchronous>, transform_indices = @transform_6, window_bounds = array<i64: 1, 32>}, {pipeline_mode = #tpu.pipeline_mode<synchronous>, transform_indices = @transform_7, window_bounds = array<i64: 32, 128>}, {pipeline_mode = #tpu.pipeline_mode<synchronous>, transform_indices = @transform_8, window_bounds = array<i64: 1, 128>}, {transform_indices = @transform_9, window_bounds = array<i64: 1, 128, 128>}, {transform_indices = @transform_10, window_bounds = array<i64: 1, 1, 128>}]} {
    %c0 = arith.constant 0 : index
    %c0_0 = arith.constant 0 : index
    %c0_1 = arith.constant 0 : index
    %0 = vector.load %arg2[%c0, %c0_0, %c0_1] : memref<1x128x8xf32, #tpu.memory_space<vmem>>, vector<1x128x8xf32>
    %1 = vector.shape_cast %0 : vector<1x128x8xf32> to vector<128x8xf32>
    %c0_2 = arith.constant 0 : index
    %c0_3 = arith.constant 0 : index
    %2 = vector.load %arg3[%c0_2, %c0_3] : memref<8x32xf32, #tpu.memory_space<vmem>>, vector<8x32xf32>
    %cst = arith.constant dense<0.000000e+00> : vector<128x32xf32>
    %3 = tpu.matmul %1, %2, %cst {dimension_numbers = #tpu.dot_dimension_numbers<[1], [0], [0], [1], [0, 0, 1, 1], [], []>} : vector<128x8xf32>, vector<8x32xf32>, vector<128x32xf32> -> vector<128x32xf32>
    %c0_4 = arith.constant 0 : index
    %c0_5 = arith.constant 0 : index
    %4 = vector.load %arg4[%c0_4, %c0_5] : memref<1x32xf32, #tpu.memory_space<vmem>>, vector<1x32xf32>
    %5 = vector.broadcast %4 : vector<1x32xf32> to vector<128x32xf32>
    %6 = arith.addf %3, %5 : vector<128x32xf32>
    %cst_6 = arith.constant 0.000000e+00 : f32
    %7 = vector.broadcast %cst_6 : f32 to vector<128x32xf32>
    %8 = arith.maximumf %6, %7 : vector<128x32xf32>
    %c0_7 = arith.constant 0 : index
    %c0_8 = arith.constant 0 : index
    %9 = vector.load %arg5[%c0_7, %c0_8] : memref<32x128xf32, #tpu.memory_space<vmem>>, vector<32x128xf32>
    %cst_9 = arith.constant dense<0.000000e+00> : vector<128x128xf32>
    %10 = tpu.matmul %8, %9, %cst_9 {dimension_numbers = #tpu.dot_dimension_numbers<[1], [0], [0], [1], [0, 0, 1, 1], [], []>} : vector<128x32xf32>, vector<32x128xf32>, vector<128x128xf32> -> vector<128x128xf32>
    %c0_10 = arith.constant 0 : index
    %c0_11 = arith.constant 0 : index
    %11 = vector.load %arg6[%c0_10, %c0_11] : memref<1x128xf32, #tpu.memory_space<vmem>>, vector<1x128xf32>
    %12 = vector.broadcast %11 : vector<1x128xf32> to vector<128x128xf32>
    %13 = arith.addf %10, %12 : vector<128x128xf32>
    %c0_12 = arith.constant 0 : index
    %c0_13 = arith.constant 0 : index
    %c0_14 = arith.constant 0 : index
    %14 = vector.load %arg11[%c0_12, %c0_13, %c0_14] : memref<1x128x128xf32, #tpu.memory_space<vmem>>, vector<1x128x128xf32>
    %15 = vector.shape_cast %14 : vector<1x128x128xf32> to vector<128x128xf32>
    %16 = vector.shape_cast %13 : vector<128x128xf32> to vector<1x128x128xf32>
    tpu.vector_store %arg11[%c0_12, %c0_13, %c0_14], %16 {strides = array<i32>} : memref<1x128x128xf32, #tpu.memory_space<vmem>>, vector<1x128x128xf32>,
    %c0_i32 = arith.constant 0 : i32
    %17 = arith.cmpi eq, %arg1, %c0_i32 : i32
    %18 = arith.extui %17 : i1 to i32
    %c0_i32_15 = arith.constant 0 : i32
    %19 = arith.cmpi ne, %18, %c0_i32_15 : i32
    scf.if %19 {
      %cst_22 = arith.constant 0.000000e+00 : f32
      %28 = vector.broadcast %cst_22 : f32 to vector<1x32xf32>
      %c0_23 = arith.constant 0 : index
      %c0_24 = arith.constant 0 : index
      %29 = vector.load %arg13[%c0_23, %c0_24] : memref<1x32xf32, #tpu.memory_space<vmem>>, vector<1x32xf32>
      tpu.vector_store %arg13[%c0_23, %c0_24], %28 {strides = array<i32>} : memref<1x32xf32, #tpu.memory_space<vmem>>, vector<1x32xf32>,
    } else {
    }
    %c0_16 = arith.constant 0 : index
    %c0_17 = arith.constant 0 : index
    %20 = vector.load %arg13[%c0_16, %c0_17] : memref<1x32xf32, #tpu.memory_space<vmem>>, vector<1x32xf32>
    %cst_18 = arith.constant dense<0.000000e+00> : vector<32xf32>
    %21 = vector.multi_reduction <add>, %8, %cst_18 [0] : vector<128x32xf32> to vector<32xf32>
    %22 = vector.shape_cast %21 : vector<32xf32> to vector<1x32xf32>
    %23 = arith.addf %20, %22 : vector<1x32xf32>
    %c0_19 = arith.constant 0 : index
    %c0_20 = arith.constant 0 : index
    %24 = vector.load %arg13[%c0_19, %c0_20] : memref<1x32xf32, #tpu.memory_space<vmem>>, vector<1x32xf32>
    tpu.vector_store %arg13[%c0_19, %c0_20], %23 {strides = array<i32>} : memref<1x32xf32, #tpu.memory_space<vmem>>, vector<1x32xf32>,
    %c1_i32 = arith.constant 1 : i32
    %25 = arith.cmpi eq, %arg1, %c1_i32 : i32
    %26 = arith.extui %25 : i1 to i32
    %c0_i32_21 = arith.constant 0 : i32
    %27 = arith.cmpi ne, %26, %c0_i32_21 : i32
    scf.if %27 {
      %c0_22 = arith.constant 0 : index
      %c0_23 = arith.constant 0 : index
      %28 = vector.load %arg13[%c0_22, %c0_23] : memref<1x32xf32, #tpu.memory_space<vmem>>, vector<1x32xf32>
      %cst_24 = arith.constant 3.906250e-03 : f32
      %29 = vector.broadcast %cst_24 : f32 to vector<1x32xf32>
      %30 = arith.mulf %28, %29 : vector<1x32xf32>
      %c0_25 = arith.constant 0 : index
      %c0_26 = arith.constant 0 : index
      %31 = vector.load %arg7[%c0_25, %c0_26] : memref<32x32xf32, #tpu.memory_space<vmem>>, vector<32x32xf32>
      %cst_27 = arith.constant dense<0.000000e+00> : vector<1x32xf32>
      %32 = tpu.matmul %30, %31, %cst_27 {dimension_numbers = #tpu.dot_dimension_numbers<[1], [0], [0], [1], [0, 0, 1, 1], [], []>} : vector<1x32xf32>, vector<32x32xf32>, vector<1x32xf32> -> vector<1x32xf32>
      %c0_28 = arith.constant 0 : index
      %c0_29 = arith.constant 0 : index
      %33 = vector.load %arg8[%c0_28, %c0_29] : memref<1x32xf32, #tpu.memory_space<vmem>>, vector<1x32xf32>
      %34 = arith.addf %32, %33 : vector<1x32xf32>
      %cst_30 = arith.constant 0.000000e+00 : f32
      %35 = vector.broadcast %cst_30 : f32 to vector<1x32xf32>
      %36 = arith.maximumf %34, %35 : vector<1x32xf32>
      %c0_31 = arith.constant 0 : index
      %c0_32 = arith.constant 0 : index
      %37 = vector.load %arg9[%c0_31, %c0_32] : memref<32x128xf32, #tpu.memory_space<vmem>>, vector<32x128xf32>
      %cst_33 = arith.constant dense<0.000000e+00> : vector<1x128xf32>
      %38 = tpu.matmul %36, %37, %cst_33 {dimension_numbers = #tpu.dot_dimension_numbers<[1], [0], [0], [1], [0, 0, 1, 1], [], []>} : vector<1x32xf32>, vector<32x128xf32>, vector<1x128xf32> -> vector<1x128xf32>
      %c0_34 = arith.constant 0 : index
      %c0_35 = arith.constant 0 : index
      %39 = vector.load %arg10[%c0_34, %c0_35] : memref<1x128xf32, #tpu.memory_space<vmem>>, vector<1x128xf32>
      %40 = arith.addf %38, %39 : vector<1x128xf32>
      %c0_36 = arith.constant 0 : index
      %c0_37 = arith.constant 0 : index
      %c0_38 = arith.constant 0 : index
      %41 = vector.load %arg12[%c0_36, %c0_37, %c0_38] : memref<1x1x128xf32, #tpu.memory_space<vmem>>, vector<1x1x128xf32>
      %42 = vector.shape_cast %41 : vector<1x1x128xf32> to vector<1x128xf32>
      %43 = vector.shape_cast %40 : vector<1x128xf32> to vector<1x1x128xf32>
      tpu.vector_store %arg12[%c0_36, %c0_37, %c0_38], %43 {strides = array<i32>} : memref<1x1x128xf32, #tpu.memory_space<vmem>>, vector<1x1x128xf32>,
    } else {
    }
    return
  }
  func.func @transform_0(%arg0: i32, %arg1: i32) -> (i32, i32, i32) {
    %c0_i32 = arith.constant 0 : i32
    %c0_i32_0 = arith.constant 0 : i32
    return %arg0, %arg1, %c0_i32 : i32, i32, i32
  }
  func.func @transform_1(%arg0: i32, %arg1: i32) -> (i32, i32) {
    %c0_i32 = arith.constant 0 : i32
    %c0_i32_0 = arith.constant 0 : i32
    %c0_i32_1 = arith.constant 0 : i32
    return %c0_i32, %c0_i32_0 : i32, i32
  }
  func.func @transform_2(%arg0: i32, %arg1: i32) -> (i32, i32) {
    %c0_i32 = arith.constant 0 : i32
    %c0_i32_0 = arith.constant 0 : i32
    %c0_i32_1 = arith.constant 0 : i32
    return %c0_i32, %c0_i32_0 : i32, i32
  }
  func.func @transform_3(%arg0: i32, %arg1: i32) -> (i32, i32) {
    %c0_i32 = arith.constant 0 : i32
    %c0_i32_0 = arith.constant 0 : i32
    %c0_i32_1 = arith.constant 0 : i32
    return %c0_i32, %c0_i32_0 : i32, i32
  }
  func.func @transform_4(%arg0: i32, %arg1: i32) -> (i32, i32) {
    %c0_i32 = arith.constant 0 : i32
    %c0_i32_0 = arith.constant 0 : i32
    %c0_i32_1 = arith.constant 0 : i32
    return %c0_i32, %c0_i32_0 : i32, i32
  }
  func.func @transform_5(%arg0: i32, %arg1: i32) -> (i32, i32) {
    %c0_i32 = arith.constant 0 : i32
    %c0_i32_0 = arith.constant 0 : i32
    %c0_i32_1 = arith.constant 0 : i32
    return %c0_i32, %c0_i32_0 : i32, i32
  }
  func.func @transform_6(%arg0: i32, %arg1: i32) -> (i32, i32) {
    %c0_i32 = arith.constant 0 : i32
    %c0_i32_0 = arith.constant 0 : i32
    %c0_i32_1 = arith.constant 0 : i32
    return %c0_i32, %c0_i32_0 : i32, i32
  }
  func.func @transform_7(%arg0: i32, %arg1: i32) -> (i32, i32) {
    %c0_i32 = arith.constant 0 : i32
    %c0_i32_0 = arith.constant 0 : i32
    %c0_i32_1 = arith.constant 0 : i32
    return %c0_i32, %c0_i32_0 : i32, i32
  }
  func.func @transform_8(%arg0: i32, %arg1: i32) -> (i32, i32) {
    %c0_i32 = arith.constant 0 : i32
    %c0_i32_0 = arith.constant 0 : i32
    %c0_i32_1 = arith.constant 0 : i32
    return %c0_i32, %c0_i32_0 : i32, i32
  }
  func.func @transform_9(%arg0: i32, %arg1: i32) -> (i32, i32, i32) {
    %c0_i32 = arith.constant 0 : i32
    %c0_i32_0 = arith.constant 0 : i32
    return %arg0, %arg1, %c0_i32 : i32, i32, i32
  }
  func.func @transform_10(%arg0: i32, %arg1: i32) -> (i32, i32, i32) {
    %c0_i32 = arith.constant 0 : i32
    %c0_i32_0 = arith.constant 0 : i32
    %c0_i32_1 = arith.constant 0 : i32
    return %arg0, %c0_i32, %c0_i32_0 : i32, i32, i32
  }
}

</mosaic_0001>

<llo_original>
// kernel: forward.1
$region0: #{forward.1}
  #allocation0 [shape = 'u32[]', space=smem, size = 0x4, offset = 0x4, fixed_abs, tag = 'smem constant byte address 0x4 - core index']
  #allocation1 [shape = 'u32[144,128]{1,0:T(1,128)}', space=vmem, size = 0x12000, scoped, tag = 'internal scratch']
  #allocation2 [shape = 'f32[1,32]{1,0:T(1,128)}', space=vmem, size = 0x200, scoped, tag = 'scratch operand']
  %s0 = inlined_call_operand.vmem [shape: f32[2,256,8], index: 0, kind: input, shape index: {}]
  %s1 = inlined_call_operand.vmem [shape: f32[8,32], index: 1, kind: input, shape index: {}]
  %s2 = inlined_call_operand.vmem [shape: f32[1,32], index: 2, kind: input, shape index: {}]
  %s3 = inlined_call_operand.vmem [shape: f32[32,128], index: 3, kind: input, shape index: {}]
  %s4 = inlined_call_operand.vmem [shape: f32[1,128], index: 4, kind: input, shape index: {}]
  %s5 = inlined_call_operand.vmem [shape: f32[32,32], index: 5, kind: input, shape index: {}]
  %s6 = inlined_call_operand.vmem [shape: f32[1,32], index: 6, kind: input, shape index: {}]
  %s7 = inlined_call_operand.vmem [shape: f32[32,128], index: 7, kind: input, shape index: {}]
  %s8 = inlined_call_operand.vmem [shape: f32[1,128], index: 8, kind: input, shape index: {}]
  %s9 = inlined_call_operand.vmem [shape: f32[2,256,128], index: 9, kind: output, shape index: {0}]
  %s10 = inlined_call_operand.vmem [shape: f32[2,1,128], index: 10, kind: output, shape index: {1}]
  %11 = xla_tuple %s9, %s10
  %s12 = sld [smem:[#allocation0]]
  $region85: #{forward.1} parent=0
    _
  %s14 = ssub.s32 1, %s12
  %s15 = scalar_select 0, %s14, %s12
  loop: start=0, step=1, limit=6
  $region2: #{forward.1} parent=0 // loop_pre_header
    _
  $region3: #{forward.1} parent=0 // loop_header
    %s17 = sphi 0, %s21
    %p18 = scmp.ge.s32.totalorder %s17, 6
    %s24 = sphi 0, %s36
    %s25 = sphi 0, %s32
    %s26 = sphi 0, %s24
    %s27 = sphi 0, %s25
    %s28 = sphi 0, %s26
    %s29 = sphi 0, %s27
    %s41 = sphi 0, %s43
    %s44 = sphi 0, %s41
    %s45 = sphi 0, %s44
    %s61 = sphi 0, %s45
    %s65 = sphi 0, %s65
    %s67 = sphi 0, %s65
    %s68 = sphi 0, %s67
    %s82 = sphi 0, %s68
    %s86 = sphi 0, %s86
    %s88 = sphi 0, %s86
    %s89 = sphi 0, %s88
    %s103 = sphi 0, %s89
    %s107 = sphi 0, %s107
    %s109 = sphi 0, %s107
    %s110 = sphi 0, %s109
    %s124 = sphi 0, %s110
    %s128 = sphi 0, %s128
    %s130 = sphi 0, %s128
    %s131 = sphi 0, %s130
    %s145 = sphi 0, %s131
    %s149 = sphi 0, %s149
    %s151 = sphi 0, %s149
    %s152 = sphi 0, %s151
    %s166 = sphi 0, %s152
    %s170 = sphi 0, %s170
    %s172 = sphi 0, %s170
    %s173 = sphi 0, %s172
    %s187 = sphi 0, %s173
    %s191 = sphi 0, %s191
    %s193 = sphi 0, %s191
    %s194 = sphi 0, %s193
    %s208 = sphi 0, %s194
    %s212 = sphi 0, %s212
    %s214 = sphi 0, %s212
    %s215 = sphi 0, %s214
    %s229 = sphi 0, %s215
    %s237 = sphi 0, %s239
    %s240 = sphi 0, %s237
    %s241 = sphi 0, %s240
    %s257 = sphi 0, %s241
    %s263 = sphi 0, %s265
    %s266 = sphi 0, %s263
    %s267 = sphi 0, %s266
    %s283 = sphi 0, %s267
  $region4: #{forward.1} parent=0 // loop_header_branch
    %20 = sbr.rel (%p18) target = $region8
  $region5: #{forward.1} parent=0 // loop_body
    %s22 = ssub.s32 %s17, 1
    %s23 = ssub.s32 %s17, 2
    %s30 = sadd.s32 1, %s25
    %p31 = scmp.ge.s32.totalorder %s30, 2
    %s32 = scalar_select %p31, 0, %s30
    %s33 = sadd.s32 1, %s24
    %s34 = scalar_select %p31, %s33, %s24
    %p35 = scmp.ge.s32.totalorder %s34, 2
    %s36 = scalar_select %p35, 0, %s34
    %s37 = ssub.s32 %s24, %s36
    %s38 = ssub.s32 %s25, %s32
    %s39 = sor.u32 %s37, %s38
    %p40 = scmp.eq.s32.totalorder %s39, 0
    %s42 = sadd.s32 %s41, 1
    %s43 = scalar_select %p40, %s41, %s42
    %p46 = pneg %p40
    %p47 = scmp.eq.s32.totalorder %s17, 3
    %p48 = por %p46, %p47
    %p49 = scmp.ne.s32.totalorder %s41, %s44
    %p50 = scmp.eq.s32.totalorder %s17, 0
    %p51 = por %p49, %p50
    %p52 = scmp.ne.s32.totalorder %s41, %s44
    %p53 = scmp.eq.s32.totalorder %s22, 3
    %p54 = por %p52, %p53
    %p55 = scmp.ne.s32.totalorder %s44, %s45
    %p56 = scmp.eq.s32.totalorder %s22, 0
    %p57 = por %p55, %p56
    %p58 = scmp.ne.s32.totalorder %s44, %s45
    %p59 = scmp.eq.s32.totalorder %s23, 3
    %p60 = por %p58, %p59
    %p62 = scmp.ne.s32.totalorder %s45, %s61
    %p63 = scmp.eq.s32.totalorder %s23, 0
    %p64 = por %p62, %p63
    %s66 = sadd.s32 %s65, 1
    %p69 = scmp.eq.s32.totalorder %s17, 3
    %p70 = scmp.ne.s32.totalorder %s65, %s67
    %p71 = scmp.eq.s32.totalorder %s17, 0
    %p72 = por %p70, %p71
    %p73 = scmp.ne.s32.totalorder %s65, %s67
    %p74 = scmp.eq.s32.totalorder %s22, 3
    %p75 = por %p73, %p74
    %p76 = scmp.ne.s32.totalorder %s67, %s68
    %p77 = scmp.eq.s32.totalorder %s22, 0
    %p78 = por %p76, %p77
    %p79 = scmp.ne.s32.totalorder %s67, %s68
    %p80 = scmp.eq.s32.totalorder %s23, 3
    %p81 = por %p79, %p80
    %p83 = scmp.ne.s32.totalorder %s68, %s82
    %p84 = scmp.eq.s32.totalorder %s23, 0
    %p85 = por %p83, %p84
    %s87 = sadd.s32 %s86, 1
    %p90 = scmp.eq.s32.totalorder %s17, 3
    %p91 = scmp.ne.s32.totalorder %s86, %s88
    %p92 = scmp.eq.s32.totalorder %s17, 0
    %p93 = por %p91, %p92
    %p94 = scmp.ne.s32.totalorder %s86, %s88
    %p95 = scmp.eq.s32.totalorder %s22, 3
    %p96 = por %p94, %p95
    %p97 = scmp.ne.s32.totalorder %s88, %s89
    %p98 = scmp.eq.s32.totalorder %s22, 0
    %p99 = por %p97, %p98
    %p100 = scmp.ne.s32.totalorder %s88, %s89
    %p101 = scmp.eq.s32.totalorder %s23, 3
    %p102 = por %p100, %p101
    %p104 = scmp.ne.s32.totalorder %s89, %s103
    %p105 = scmp.eq.s32.totalorder %s23, 0
    %p106 = por %p104, %p105
    %s108 = sadd.s32 %s107, 1
    %p111 = scmp.eq.s32.totalorder %s17, 3
    %p112 = scmp.ne.s32.totalorder %s107, %s109
    %p113 = scmp.eq.s32.totalorder %s17, 0
    %p114 = por %p112, %p113
    %p115 = scmp.ne.s32.totalorder %s107, %s109
    %p116 = scmp.eq.s32.totalorder %s22, 3
    %p117 = por %p115, %p116
    %p118 = scmp.ne.s32.totalorder %s109, %s110
    %p119 = scmp.eq.s32.totalorder %s22, 0
    %p120 = por %p118, %p119
    %p121 = scmp.ne.s32.totalorder %s109, %s110
    %p122 = scmp.eq.s32.totalorder %s23, 3
    %p123 = por %p121, %p122
    %p125 = scmp.ne.s32.totalorder %s110, %s124
    %p126 = scmp.eq.s32.totalorder %s23, 0
    %p127 = por %p125, %p126
    %s129 = sadd.s32 %s128, 1
    %p132 = scmp.eq.s32.totalorder %s17, 3
    %p133 = scmp.ne.s32.totalorder %s128, %s130
    %p134 = scmp.eq.s32.totalorder %s17, 0
    %p135 = por %p133, %p134
    %p136 = scmp.ne.s32.totalorder %s128, %s130
    %p137 = scmp.eq.s32.totalorder %s22, 3
    %p138 = por %p136, %p137
    %p139 = scmp.ne.s32.totalorder %s130, %s131
    %p140 = scmp.eq.s32.totalorder %s22, 0
    %p141 = por %p139, %p140
    %p142 = scmp.ne.s32.totalorder %s130, %s131
    %p143 = scmp.eq.s32.totalorder %s23, 3
    %p144 = por %p142, %p143
    %p146 = scmp.ne.s32.totalorder %s131, %s145
    %p147 = scmp.eq.s32.totalorder %s23, 0
    %p148 = por %p146, %p147
    %s150 = sadd.s32 %s149, 1
    %p153 = scmp.eq.s32.totalorder %s17, 3
    %p154 = scmp.ne.s32.totalorder %s149, %s151
    %p155 = scmp.eq.s32.totalorder %s17, 0
    %p156 = por %p154, %p155
    %p157 = scmp.ne.s32.totalorder %s149, %s151
    %p158 = scmp.eq.s32.totalorder %s22, 3
    %p159 = por %p157, %p158
    %p160 = scmp.ne.s32.totalorder %s151, %s152
    %p161 = scmp.eq.s32.totalorder %s22, 0
    %p162 = por %p160, %p161
    %p163 = scmp.ne.s32.totalorder %s151, %s152
    %p164 = scmp.eq.s32.totalorder %s23, 3
    %p165 = por %p163, %p164
    %p167 = scmp.ne.s32.totalorder %s152, %s166
    %p168 = scmp.eq.s32.totalorder %s23, 0
    %p169 = por %p167, %p168
    %s171 = sadd.s32 %s170, 1
    %p174 = scmp.eq.s32.totalorder %s17, 3
    %p175 = scmp.ne.s32.totalorder %s170, %s172
    %p176 = scmp.eq.s32.totalorder %s17, 0
    %p177 = por %p175, %p176
    %p178 = scmp.ne.s32.totalorder %s170, %s172
    %p179 = scmp.eq.s32.totalorder %s22, 3
    %p180 = por %p178, %p179
    %p181 = scmp.ne.s32.totalorder %s172, %s173
    %p182 = scmp.eq.s32.totalorder %s22, 0
    %p183 = por %p181, %p182
    %p184 = scmp.ne.s32.totalorder %s172, %s173
    %p185 = scmp.eq.s32.totalorder %s23, 3
    %p186 = por %p184, %p185
    %p188 = scmp.ne.s32.totalorder %s173, %s187
    %p189 = scmp.eq.s32.totalorder %s23, 0
    %p190 = por %p188, %p189
    %s192 = sadd.s32 %s191, 1
    %p195 = scmp.eq.s32.totalorder %s17, 3
    %p196 = scmp.ne.s32.totalorder %s191, %s193
    %p197 = scmp.eq.s32.totalorder %s17, 0
    %p198 = por %p196, %p197
    %p199 = scmp.ne.s32.totalorder %s191, %s193
    %p200 = scmp.eq.s32.totalorder %s22, 3
    %p201 = por %p199, %p200
    %p202 = scmp.ne.s32.totalorder %s193, %s194
    %p203 = scmp.eq.s32.totalorder %s22, 0
    %p204 = por %p202, %p203
    %p205 = scmp.ne.s32.totalorder %s193, %s194
    %p206 = scmp.eq.s32.totalorder %s23, 3
    %p207 = por %p205, %p206
    %p209 = scmp.ne.s32.totalorder %s194, %s208
    %p210 = scmp.eq.s32.totalorder %s23, 0
    %p211 = por %p209, %p210
    %s213 = sadd.s32 %s212, 1
    %p216 = scmp.eq.s32.totalorder %s17, 3
    %p217 = scmp.ne.s32.totalorder %s212, %s214
    %p218 = scmp.eq.s32.totalorder %s17, 0
    %p219 = por %p217, %p218
    %p220 = scmp.ne.s32.totalorder %s212, %s214
    %p221 = scmp.eq.s32.totalorder %s22, 3
    %p222 = por %p220, %p221
    %p223 = scmp.ne.s32.totalorder %s214, %s215
    %p224 = scmp.eq.s32.totalorder %s22, 0
    %p225 = por %p223, %p224
    %p226 = scmp.ne.s32.totalorder %s214, %s215
    %p227 = scmp.eq.s32.totalorder %s23, 3
    %p228 = por %p226, %p227
    %p230 = scmp.ne.s32.totalorder %s215, %s229
    %p231 = scmp.eq.s32.totalorder %s23, 0
    %p232 = por %p230, %p231
    %s233 = ssub.s32 %s24, %s36
    %s234 = ssub.s32 %s25, %s32
    %s235 = sor.u32 %s233, %s234
    %p236 = scmp.eq.s32.totalorder %s235, 0
    %s238 = sadd.s32 %s237, 1
    %s239 = scalar_select %p236, %s237, %s238
    %p242 = pneg %p236
    %p243 = scmp.eq.s32.totalorder %s17, 3
    %p244 = por %p242, %p243
    %p245 = scmp.ne.s32.totalorder %s237, %s240
    %p246 = scmp.eq.s32.totalorder %s17, 0
    %p247 = por %p245, %p246
    %p248 = scmp.ne.s32.totalorder %s237, %s240
    %p249 = scmp.eq.s32.totalorder %s22, 3
    %p250 = por %p248, %p249
    %p251 = scmp.ne.s32.totalorder %s240, %s241
    %p252 = scmp.eq.s32.totalorder %s22, 0
    %p253 = por %p251, %p252
    %p254 = scmp.ne.s32.totalorder %s240, %s241
    %p255 = scmp.eq.s32.totalorder %s23, 3
    %p256 = por %p254, %p255
    %p258 = scmp.ne.s32.totalorder %s241, %s257
    %p259 = scmp.eq.s32.totalorder %s23, 0
    %p260 = por %p258, %p259
    %s261 = ssub.s32 %s24, %s36
    %p262 = scmp.eq.s32.totalorder %s261, 0
    %s264 = sadd.s32 %s263, 1
    %s265 = scalar_select %p262, %s263, %s264
    %p268 = pneg %p262
    %p269 = scmp.eq.s32.totalorder %s17, 3
    %p270 = por %p268, %p269
    %p271 = scmp.ne.s32.totalorder %s263, %s266
    %p272 = scmp.eq.s32.totalorder %s17, 0
    %p273 = por %p271, %p272
    %p274 = scmp.ne.s32.totalorder %s263, %s266
    %p275 = scmp.eq.s32.totalorder %s22, 3
    %p276 = por %p274, %p275
    %p277 = scmp.ne.s32.totalorder %s266, %s267
    %p278 = scmp.eq.s32.totalorder %s22, 0
    %p279 = por %p277, %p278
    %p280 = scmp.ne.s32.totalorder %s266, %s267
    %p281 = scmp.eq.s32.totalorder %s23, 3
    %p282 = por %p280, %p281
    %p284 = scmp.ne.s32.totalorder %s267, %s283
    %p285 = scmp.eq.s32.totalorder %s23, 0
    %p286 = por %p284, %p285
    %p287 = scmp.le.s32.totalorder 1, %s17
    %p288 = scmp.lt.s32.totalorder %s17, 5
    %p289 = pnand %p287, %p288
    %p290 = pneg %p289
    // Predicated region
    $region9: #{forward.1} parent=5 // pred_check
      _
    $region10: #{forward.1} parent=5 // pred_check_branch
      %292 = sbr.rel (%p289) target = $region12
    $region11: #{forward.1} parent=5 // pred_region
      %s293 = ssub.s32 %s17, 1
      // Predicated region
      $region13: #{forward.1} parent=11 // pred_check
        %p294 = pneg %p78
      $region14: #{forward.1} parent=11 // pred_check_branch
        %296 = sbr.rel (%p294) target = $region16
      $region15: #{forward.1} parent=11 // pred_region
        _
      $region16: #{forward.1} parent=11 // pred_fallthru
        _
      // Predicated region
      $region17: #{forward.1} parent=11 // pred_check
        %p297 = pneg %p99
      $region18: #{forward.1} parent=11 // pred_check_branch
        %299 = sbr.rel (%p297) target = $region20
      $region19: #{forward.1} parent=11 // pred_region
        _
      $region20: #{forward.1} parent=11 // pred_fallthru
        _
      // Predicated region
      $region21: #{forward.1} parent=11 // pred_check
        %p300 = pneg %p120
      $region22: #{forward.1} parent=11 // pred_check_branch
        %302 = sbr.rel (%p300) target = $region24
      $region23: #{forward.1} parent=11 // pred_region
        _
      $region24: #{forward.1} parent=11 // pred_fallthru
        _
      // Predicated region
      $region25: #{forward.1} parent=11 // pred_check
        %p303 = pneg %p141
      $region26: #{forward.1} parent=11 // pred_check_branch
        %305 = sbr.rel (%p303) target = $region28
      $region27: #{forward.1} parent=11 // pred_region
        _
      $region28: #{forward.1} parent=11 // pred_fallthru
        _
      // Predicated region
      $region29: #{forward.1} parent=11 // pred_check
        %p306 = pneg %p162
      $region30: #{forward.1} parent=11 // pred_check_branch
        %308 = sbr.rel (%p306) target = $region32
      $region31: #{forward.1} parent=11 // pred_region
        _
      $region32: #{forward.1} parent=11 // pred_fallthru
        _
      // Predicated region
      $region33: #{forward.1} parent=11 // pred_check
        %p309 = pneg %p183
      $region34: #{forward.1} parent=11 // pred_check_branch
        %311 = sbr.rel (%p309) target = $region36
      $region35: #{forward.1} parent=11 // pred_region
        _
      $region36: #{forward.1} parent=11 // pred_fallthru
        _
      // Predicated region
      $region37: #{forward.1} parent=11 // pred_check
        %p312 = pneg %p204
      $region38: #{forward.1} parent=11 // pred_check_branch
        %314 = sbr.rel (%p312) target = $region40
      $region39: #{forward.1} parent=11 // pred_region
        _
      $region40: #{forward.1} parent=11 // pred_fallthru
        _
      // Predicated region
      $region41: #{forward.1} parent=11 // pred_check
        %p315 = pneg %p225
      $region42: #{forward.1} parent=11 // pred_check_branch
        %317 = sbr.rel (%p315) target = $region44
      $region43: #{forward.1} parent=11 // pred_region
        _
      $region44: #{forward.1} parent=11 // pred_fallthru
        _
    $region12: #{forward.1} parent=5 // pred_fallthru
      _
    %p318 = scmp.lt.s32.totalorder %s17, 4
    // Predicated region
    $region45: #{forward.1} parent=5 // pred_check
      %p319 = pneg %p318
    $region46: #{forward.1} parent=5 // pred_check_branch
      %321 = sbr.rel (%p319) target = $region48
    $region47: #{forward.1} parent=5 // pred_region
      // Predicated region
      $region49: #{forward.1} parent=47 // pred_check
        %p322 = pneg %p51
      $region50: #{forward.1} parent=47 // pred_check_branch
        %324 = sbr.rel (%p322) target = $region52
      $region51: #{forward.1} parent=47 // pred_region
        %s325 = smul.u32 16, %s25
        %p326 = scmp.lt.s32.totalorder %s24, 1
        %s327 = scalar_select %p326, %s24, 1
        %p328 = scmp.lt.s32.totalorder %s325, 31
        %s329 = scalar_select %p328, %s325, 31
        %s330 = smul.addr %s327, 32
        %s331 = sadd.s32 %s329, %s330
        %s332 = smul.addr %s331, 8
        %s333 = scalar_lea.vmem %s0, %s332
        %s334 = smul.u32 16, %s25
      $region52: #{forward.1} parent=47 // pred_fallthru
        _
    $region48: #{forward.1} parent=5 // pred_fallthru
      _
    %p335 = scmp.le.s32.totalorder 1, %s17
    %p336 = scmp.lt.s32.totalorder %s17, 5
    %p337 = pnand %p335, %p336
    %p338 = pneg %p337
    // Predicated region
    $region53: #{forward.1} parent=5 // pred_check
      _
    $region54: #{forward.1} parent=5 // pred_check_branch
      %340 = sbr.rel (%p337) target = $region56
    $region55: #{forward.1} parent=5 // pred_region
      %s341 = ssub.s32 %s17, 1
      %s342 = smul.u32 16, %s27
      %p343 = scmp.lt.s32.totalorder %s26, 1
      %s344 = scalar_select %p343, %s26, 1
      %p345 = scmp.lt.s32.totalorder %s342, 31
      %s346 = scalar_select %p345, %s342, 31
      %s347 = smul.addr %s344, 32
      %s348 = sadd.s32 %s346, %s347
      %s349 = smul.addr %s348, 8
      %s350 = scalar_lea.vmem %s0, %s349
      %p351 = pneg %p57
      %p352 = pneg %p54
      %p353 = pneg %p78
      %p354 = pneg %p75
      %p355 = pneg %p99
      %p356 = pneg %p96
      %p357 = pneg %p120
      %p358 = pneg %p117
      %p359 = pneg %p141
      %p360 = pneg %p138
      %p361 = pneg %p162
      %p362 = pneg %p159
      %p363 = pneg %p183
      %p364 = pneg %p180
      %p365 = pneg %p204
      %p366 = pneg %p201
      %p367 = pneg %p225
      %p368 = pneg %p222
      %p369 = pneg %p253
      %p370 = pneg %p250
      %s371 = smul.u32 16, %s27
      %p372 = scmp.lt.s32.totalorder %s26, 1
      %s373 = scalar_select %p372, %s26, 1
      %p374 = scmp.lt.s32.totalorder %s371, 31
      %s375 = scalar_select %p374, %s371, 31
      %s376 = smul.addr %s373, 32
      %s377 = sadd.s32 %s375, %s376
      %s378 = smul.addr %s377, 8
      %s379 = scalar_lea.vmem %s9, %s378
      %p380 = pneg %p279
      %p381 = pneg %p276
      %p382 = scmp.lt.s32.totalorder %s26, 1
      %s383 = scalar_select %p382, %s26, 1
      %s384 = scalar_lea.vmem %s10, %s383
      %s385 = smul.u32 16, %s27
      %p386 = scmp.lt.s32.totalorder %s26, 1
      %s387 = scalar_select %p386, %s26, 1
      %p388 = scmp.lt.s32.totalorder %s385, 31
      %s389 = scalar_select %p388, %s385, 31
      %s390 = smul.addr %s387, 32
      %s391 = sadd.s32 %s389, %s390
      %s392 = smul.addr %s391, 8
      %s393 = scalar_lea.vmem %s0, %s392
      %s394 = smul.u32 16, %s27
      %s395 = smul.u32 16, %s27
      %p396 = scmp.lt.s32.totalorder %s26, 1
      %s397 = scalar_select %p396, %s26, 1
      %p398 = scmp.lt.s32.totalorder %s395, 31
      %s399 = scalar_select %p398, %s395, 31
      %s400 = smul.addr %s397, 32
      %s401 = sadd.s32 %s399, %s400
      %s402 = smul.addr %s401, 8
      %s403 = scalar_lea.vmem %s9, %s402
      %s404 = smul.u32 16, %s27
      %p405 = scmp.lt.s32.totalorder %s26, 1
      %s406 = scalar_select %p405, %s26, 1
      %s407 = scalar_lea.vmem %s10, %s406
      %v408 = vld [vmem:[%s393] sm:$0xff]
      %v409 = vld [vmem:[%s393 + $0x8] sm:$0xff]
      %v410 = vld [vmem:[%s393 + $0x10] sm:$0xff]
      %v411 = vld [vmem:[%s393 + $0x18] sm:$0xff]
      %v412 = vld [vmem:[%s393 + $0x20] sm:$0xff]
      %v413 = vld [vmem:[%s393 + $0x28] sm:$0xff]
      %v414 = vld [vmem:[%s393 + $0x30] sm:$0xff]
      %v415 = vld [vmem:[%s393 + $0x38] sm:$0xff]
      %v416 = vld [vmem:[%s393 + $0x40] sm:$0xff]
      %v417 = vld [vmem:[%s393 + $0x48] sm:$0xff]
      %v418 = vld [vmem:[%s393 + $0x50] sm:$0xff]
      %v419 = vld [vmem:[%s393 + $0x58] sm:$0xff]
      %v420 = vld [vmem:[%s393 + $0x60] sm:$0xff]
      %v421 = vld [vmem:[%s393 + $0x68] sm:$0xff]
      %v422 = vld [vmem:[%s393 + $0x70] sm:$0xff]
      %v423 = vld [vmem:[%s393 + $0x78] sm:$0xff]
      %v424 = vld [vmem:[%s1] sm:$0xff]
      %v425 = vld [vmem:[%s2] sm:$0x1]
      %v427 = vlaneseq
      %v428 = vshrl.u32 %v427, 7
      %v429 = vsub.s32 0, %v428
      %v430 = vrot.slane %v425, %v429
      %vm432 = vcmask 64512
      %v434 = vsel %vm432, %v408, 0
      %v437 = vsel %vm432, %v409, 0
      %v440 = vsel %vm432, %v410, 0
      %v443 = vsel %vm432, %v411, 0
      %v446 = vsel %vm432, %v412, 0
      %v449 = vsel %vm432, %v413, 0
      %v452 = vsel %vm432, %v414, 0
      %v455 = vsel %vm432, %v415, 0
      %v458 = vsel %vm432, %v416, 0
      %v461 = vsel %vm432, %v417, 0
      %v464 = vsel %vm432, %v418, 0
      %v467 = vsel %vm432, %v419, 0
      %v470 = vsel %vm432, %v420, 0
      %v473 = vsel %vm432, %v421, 0
      %v476 = vsel %vm432, %v422, 0
      %v479 = vsel %vm432, %v423, 0
      %481 = vmatprep.subr.mxu0 0.0
      %482 = vmatpush1.msra.mxu0 0.0
      %483 = vmatprep.subr.mxu0 0.0
      %484 = vmatpush1.msra.mxu0 0.0
      %485 = vmatprep.subr.mxu0 0.0
      %486 = vmatpush1.msra.mxu0 0.0
      %487 = vmatprep.subr.mxu0 0.0
      %488 = vmatpush1.msra.mxu0 0.0
      %489 = vmatprep.subr.mxu0 0.0
      %490 = vmatpush1.msra.mxu0 0.0
      %491 = vmatprep.subr.mxu0 0.0
      %492 = vmatpush1.msra.mxu0 0.0
      %493 = vmatprep.subr.mxu0 0.0
      %494 = vmatpush1.msra.mxu0 0.0
      %495 = vmatprep.subr.mxu0 0.0
      %496 = vmatpush1.msra.mxu0 0.0
      %497 = vmatprep.subr.mxu0 0.0
      %498 = vmatpush1.msra.mxu0 0.0
      %499 = vmatprep.subr.mxu0 0.0
      %500 = vmatpush1.msra.mxu0 0.0
      %501 = vmatprep.subr.mxu0 0.0
      %502 = vmatpush1.msra.mxu0 0.0
      %503 = vmatprep.subr.mxu0 0.0
      %504 = vmatpush1.msra.mxu0 0.0
      %505 = vmatprep.subr.mxu0 0.0
      %506 = vmatpush1.msra.mxu0 0.0
      %507 = vmatprep.subr.mxu0 0.0
      %508 = vmatpush1.msra.mxu0 0.0
      %509 = vmatprep.subr.mxu0 0.0
      %510 = vmatpush1.msra.mxu0 0.0
      %511 = vmatprep.subr.mxu0 0.0
      %512 = vmatpush1.msra.mxu0 %v424
      %513 = vmatprep.subr.mxu0 0.0
      %514 = vmatpush2.msra.mxu0 0.0
      %515 = vmatprep.subr.mxu0 0.0
      %516 = vmatpush2.msra.mxu0 0.0
      %517 = vmatprep.subr.mxu0 0.0
      %518 = vmatpush2.msra.mxu0 0.0
      %519 = vmatprep.subr.mxu0 0.0
      %520 = vmatpush2.msra.mxu0 0.0
      %521 = vmatprep.subr.mxu0 0.0
      %522 = vmatpush2.msra.mxu0 0.0
      %523 = vmatprep.subr.mxu0 0.0
      %524 = vmatpush2.msra.mxu0 0.0
      %525 = vmatprep.subr.mxu0 0.0
      %526 = vmatpush2.msra.mxu0 0.0
      %527 = vmatprep.subr.mxu0 0.0
      %528 = vmatpush2.msra.mxu0 0.0
      %529 = vmatprep.subr.mxu0 0.0
      %530 = vmatpush2.msra.mxu0 0.0
      %531 = vmatprep.subr.mxu0 0.0
      %532 = vmatpush2.msra.mxu0 0.0
      %533 = vmatprep.subr.mxu0 0.0
      %534 = vmatpush2.msra.mxu0 0.0
      %535 = vmatprep.subr.mxu0 0.0
      %536 = vmatpush2.msra.mxu0 0.0
      %537 = vmatprep.subr.mxu0 0.0
      %538 = vmatpush2.msra.mxu0 0.0
      %539 = vmatprep.subr.mxu0 0.0
      %540 = vmatpush2.msra.mxu0 0.0
      %541 = vmatprep.subr.mxu0 0.0
      %542 = vmatpush2.msra.mxu0 0.0
      %543 = vmatprep.subr.mxu0 0.0
      %544 = vmatpush2.msra.mxu0 0.0
      %545 = vmatprep.mubr.f32.mxu0 0.0
      %546 = vmatmul.mubr.f32.gmra.mxu0 %v434
      %v547 = vpop.f32.mrf.mxu0
      %v548 = vadd.f32 %v430, %v547
      %v549 = vpop.f32.mrf.mxu0
      %550 = vmatprep.mubr.f32.mxu0 0.0
      %551 = vmatmul.mubr.f32.gmra.mxu0 %v437
      %v552 = vpop.f32.mrf.mxu0
      %v553 = vadd.f32 %v430, %v552
      %v554 = vpop.f32.mrf.mxu0
      %555 = vmatprep.mubr.f32.mxu0 0.0
      %556 = vmatmul.mubr.f32.gmra.mxu0 %v440
      %v557 = vpop.f32.mrf.mxu0
      %v558 = vadd.f32 %v430, %v557
      %v559 = vpop.f32.mrf.mxu0
      %560 = vmatprep.mubr.f32.mxu0 0.0
      %561 = vmatmul.mubr.f32.gmra.mxu0 %v443
      %v562 = vpop.f32.mrf.mxu0
      %v563 = vadd.f32 %v430, %v562
      %v564 = vpop.f32.mrf.mxu0
      %565 = vmatprep.mubr.f32.mxu0 0.0
      %566 = vmatmul.mubr.f32.gmra.mxu0 %v446
      %v567 = vpop.f32.mrf.mxu0
      %v568 = vadd.f32 %v430, %v567
      %v569 = vpop.f32.mrf.mxu0
      %570 = vmatprep.mubr.f32.mxu0 0.0
      %571 = vmatmul.mubr.f32.gmra.mxu0 %v449
      %v572 = vpop.f32.mrf.mxu0
      %v573 = vadd.f32 %v430, %v572
      %v574 = vpop.f32.mrf.mxu0
      %575 = vmatprep.mubr.f32.mxu0 0.0
      %576 = vmatmul.mubr.f32.gmra.mxu0 %v452
      %v577 = vpop.f32.mrf.mxu0
      %v578 = vadd.f32 %v430, %v577
      %v579 = vpop.f32.mrf.mxu0
      %580 = vmatprep.mubr.f32.mxu0 0.0
      %581 = vmatmul.mubr.f32.gmra.mxu0 %v455
      %v582 = vpop.f32.mrf.mxu0
      %v583 = vadd.f32 %v430, %v582
      %v584 = vpop.f32.mrf.mxu0
      %585 = vmatprep.mubr.f32.mxu0 0.0
      %586 = vmatmul.mubr.f32.gmra.mxu0 %v458
      %v587 = vpop.f32.mrf.mxu0
      %v588 = vadd.f32 %v430, %v587
      %v589 = vpop.f32.mrf.mxu0
      %590 = vmatprep.mubr.f32.mxu0 0.0
      %591 = vmatmul.mubr.f32.gmra.mxu0 %v461
      %v592 = vpop.f32.mrf.mxu0
      %v593 = vadd.f32 %v430, %v592
      %v594 = vpop.f32.mrf.mxu0
      %595 = vmatprep.mubr.f32.mxu0 0.0
      %596 = vmatmul.mubr.f32.gmra.mxu0 %v464
      %v597 = vpop.f32.mrf.mxu0
      %v598 = vadd.f32 %v430, %v597
      %v599 = vpop.f32.mrf.mxu0
      %600 = vmatprep.mubr.f32.mxu0 0.0
      %601 = vmatmul.mubr.f32.gmra.mxu0 %v467
      %v602 = vpop.f32.mrf.mxu0
      %v603 = vadd.f32 %v430, %v602
      %v604 = vpop.f32.mrf.mxu0
      %605 = vmatprep.mubr.f32.mxu0 0.0
      %606 = vmatmul.mubr.f32.gmra.mxu0 %v470
      %v607 = vpop.f32.mrf.mxu0
      %v608 = vadd.f32 %v430, %v607
      %v609 = vpop.f32.mrf.mxu0
      %610 = vmatprep.mubr.f32.mxu0 0.0
      %611 = vmatmul.mubr.f32.gmra.mxu0 %v473
      %v612 = vpop.f32.mrf.mxu0
      %v613 = vadd.f32 %v430, %v612
      %v614 = vpop.f32.mrf.mxu0
      %615 = vmatprep.mubr.f32.mxu0 0.0
      %616 = vmatmul.mubr.f32.gmra.mxu0 %v476
      %v617 = vpop.f32.mrf.mxu0
      %v618 = vadd.f32 %v430, %v617
      %v619 = vpop.f32.mrf.mxu0
      %620 = vmatprep.mubr.f32.mxu0 0.0
      %621 = vmatmul.mubr.f32.gmra.mxu0 %v479
      %v622 = vpop.f32.mrf.mxu0
      %v623 = vadd.f32 %v430, %v622
      %v624 = vpop.f32.mrf.mxu0
      %625 = vdwg.mxu0
      %v626 = vmax.f32 %v548, 0.0
      %v627 = vmax.f32 %v553, 0.0
      %v628 = vmax.f32 %v558, 0.0
      %v629 = vmax.f32 %v563, 0.0
      %v630 = vmax.f32 %v568, 0.0
      %v631 = vmax.f32 %v573, 0.0
      %v632 = vmax.f32 %v578, 0.0
      %v633 = vmax.f32 %v583, 0.0
      %v634 = vmax.f32 %v588, 0.0
      %v635 = vmax.f32 %v593, 0.0
      %v636 = vmax.f32 %v598, 0.0
      %v637 = vmax.f32 %v603, 0.0
      %v638 = vmax.f32 %v608, 0.0
      %v639 = vmax.f32 %v613, 0.0
      %v640 = vmax.f32 %v618, 0.0
      %v641 = vmax.f32 %v623, 0.0
      %v642 = vld [vmem:[%s3] sm:$0xff]
      %v643 = vld [vmem:[%s3 + $0x8] sm:$0xff]
      %v644 = vld [vmem:[%s3 + $0x10] sm:$0xff]
      %v645 = vld [vmem:[%s3 + $0x18] sm:$0xff]
      %v646 = vld [vmem:[%s4] sm:$0x1]
      %v648 = vlaneseq
      %v649 = vshrl.u32 %v648, 7
      %v650 = vsub.s32 0, %v649
      %v651 = vrot.slane %v646, %v650
      %vm653 = vcmask 261120
      %v655 = vsel %vm653, %v626, 0
      %v658 = vsel %vm653, %v627, 0
      %v661 = vsel %vm653, %v628, 0
      %v664 = vsel %vm653, %v629, 0
      %v667 = vsel %vm653, %v630, 0
      %v670 = vsel %vm653, %v631, 0
      %v673 = vsel %vm653, %v632, 0
      %v676 = vsel %vm653, %v633, 0
      %v679 = vsel %vm653, %v634, 0
      %v682 = vsel %vm653, %v635, 0
      %v685 = vsel %vm653, %v636, 0
      %v688 = vsel %vm653, %v637, 0
      %v691 = vsel %vm653, %v638, 0
      %v694 = vsel %vm653, %v639, 0
      %v697 = vsel %vm653, %v640, 0
      %v700 = vsel %vm653, %v641, 0
      %702 = vmatprep.subr.mxu0 0.0
      %703 = vmatpush1.msra.mxu0 0.0
      %704 = vmatprep.subr.mxu0 0.0
      %705 = vmatpush1.msra.mxu0 0.0
      %706 = vmatprep.subr.mxu0 0.0
      %707 = vmatpush1.msra.mxu0 0.0
      %708 = vmatprep.subr.mxu0 0.0
      %709 = vmatpush1.msra.mxu0 0.0
      %710 = vmatprep.subr.mxu0 0.0
      %711 = vmatpush1.msra.mxu0 0.0
      %712 = vmatprep.subr.mxu0 0.0
      %713 = vmatpush1.msra.mxu0 0.0
      %714 = vmatprep.subr.mxu0 0.0
      %715 = vmatpush1.msra.mxu0 0.0
      %716 = vmatprep.subr.mxu0 0.0
      %717 = vmatpush1.msra.mxu0 0.0
      %718 = vmatprep.subr.mxu0 0.0
      %719 = vmatpush1.msra.mxu0 0.0
      %720 = vmatprep.subr.mxu0 0.0
      %721 = vmatpush1.msra.mxu0 0.0
      %722 = vmatprep.subr.mxu0 0.0
      %723 = vmatpush1.msra.mxu0 0.0
      %724 = vmatprep.subr.mxu0 0.0
      %725 = vmatpush1.msra.mxu0 0.0
      %726 = vmatprep.subr.mxu0 0.0
      %727 = vmatpush1.msra.mxu0 %v645
      %728 = vmatprep.subr.mxu0 0.0
      %729 = vmatpush1.msra.mxu0 %v644
      %730 = vmatprep.subr.mxu0 0.0
      %731 = vmatpush1.msra.mxu0 %v643
      %732 = vmatprep.subr.mxu0 0.0
      %733 = vmatpush1.msra.mxu0 %v642
      %734 = vmatprep.subr.mxu0 0.0
      %735 = vmatpush2.msra.mxu0 0.0
      %736 = vmatprep.subr.mxu0 0.0
      %737 = vmatpush2.msra.mxu0 0.0
      %738 = vmatprep.subr.mxu0 0.0
      %739 = vmatpush2.msra.mxu0 0.0
      %740 = vmatprep.subr.mxu0 0.0
      %741 = vmatpush2.msra.mxu0 0.0
      %742 = vmatprep.subr.mxu0 0.0
      %743 = vmatpush2.msra.mxu0 0.0
      %744 = vmatprep.subr.mxu0 0.0
      %745 = vmatpush2.msra.mxu0 0.0
      %746 = vmatprep.subr.mxu0 0.0
      %747 = vmatpush2.msra.mxu0 0.0
      %748 = vmatprep.subr.mxu0 0.0
      %749 = vmatpush2.msra.mxu0 0.0
      %750 = vmatprep.subr.mxu0 0.0
      %751 = vmatpush2.msra.mxu0 0.0
      %752 = vmatprep.subr.mxu0 0.0
      %753 = vmatpush2.msra.mxu0 0.0
      %754 = vmatprep.subr.mxu0 0.0
      %755 = vmatpush2.msra.mxu0 0.0
      %756 = vmatprep.subr.mxu0 0.0
      %757 = vmatpush2.msra.mxu0 0.0
      %758 = vmatprep.subr.mxu0 0.0
      %759 = vmatpush2.msra.mxu0 0.0
      %760 = vmatprep.subr.mxu0 0.0
      %761 = vmatpush2.msra.mxu0 0.0
      %762 = vmatprep.subr.mxu0 0.0
      %763 = vmatpush2.msra.mxu0 0.0
      %764 = vmatprep.subr.mxu0 0.0
      %765 = vmatpush2.msra.mxu0 0.0
      %766 = vmatprep.mubr.f32.mxu0 0.0
      %767 = vmatmul.mubr.f32.gmra.mxu0 %v655
      %v768 = vpop.f32.mrf.mxu0
      %v769 = vadd.f32 %v651, %v768
      %v770 = vpop.f32.mrf.mxu0
      %771 = vmatprep.mubr.f32.mxu0 0.0
      %772 = vmatmul.mubr.f32.gmra.mxu0 %v658
      %v773 = vpop.f32.mrf.mxu0
      %v774 = vadd.f32 %v651, %v773
      %v775 = vpop.f32.mrf.mxu0
      %776 = vmatprep.mubr.f32.mxu0 0.0
      %777 = vmatmul.mubr.f32.gmra.mxu0 %v661
      %v778 = vpop.f32.mrf.mxu0
      %v779 = vadd.f32 %v651, %v778
      %v780 = vpop.f32.mrf.mxu0
      %781 = vmatprep.mubr.f32.mxu0 0.0
      %782 = vmatmul.mubr.f32.gmra.mxu0 %v664
      %v783 = vpop.f32.mrf.mxu0
      %v784 = vadd.f32 %v651, %v783
      %v785 = vpop.f32.mrf.mxu0
      %786 = vmatprep.mubr.f32.mxu0 0.0
      %787 = vmatmul.mubr.f32.gmra.mxu0 %v667
      %v788 = vpop.f32.mrf.mxu0
      %v789 = vadd.f32 %v651, %v788
      %v790 = vpop.f32.mrf.mxu0
      %791 = vmatprep.mubr.f32.mxu0 0.0
      %792 = vmatmul.mubr.f32.gmra.mxu0 %v670
      %v793 = vpop.f32.mrf.mxu0
      %v794 = vadd.f32 %v651, %v793
      %v795 = vpop.f32.mrf.mxu0
      %796 = vmatprep.mubr.f32.mxu0 0.0
      %797 = vmatmul.mubr.f32.gmra.mxu0 %v673
      %v798 = vpop.f32.mrf.mxu0
      %v799 = vadd.f32 %v651, %v798
      %v800 = vpop.f32.mrf.mxu0
      %801 = vmatprep.mubr.f32.mxu0 0.0
      %802 = vmatmul.mubr.f32.gmra.mxu0 %v676
      %v803 = vpop.f32.mrf.mxu0
      %v804 = vadd.f32 %v651, %v803
      %v805 = vpop.f32.mrf.mxu0
      %806 = vmatprep.mubr.f32.mxu0 0.0
      %807 = vmatmul.mubr.f32.gmra.mxu0 %v679
      %v808 = vpop.f32.mrf.mxu0
      %v809 = vadd.f32 %v651, %v808
      %v810 = vpop.f32.mrf.mxu0
      %811 = vmatprep.mubr.f32.mxu0 0.0
      %812 = vmatmul.mubr.f32.gmra.mxu0 %v682
      %v813 = vpop.f32.mrf.mxu0
      %v814 = vadd.f32 %v651, %v813
      %v815 = vpop.f32.mrf.mxu0
      %816 = vmatprep.mubr.f32.mxu0 0.0
      %817 = vmatmul.mubr.f32.gmra.mxu0 %v685
      %v818 = vpop.f32.mrf.mxu0
      %v819 = vadd.f32 %v651, %v818
      %v820 = vpop.f32.mrf.mxu0
      %821 = vmatprep.mubr.f32.mxu0 0.0
      %822 = vmatmul.mubr.f32.gmra.mxu0 %v688
      %v823 = vpop.f32.mrf.mxu0
      %v824 = vadd.f32 %v651, %v823
      %v825 = vpop.f32.mrf.mxu0
      %826 = vmatprep.mubr.f32.mxu0 0.0
      %827 = vmatmul.mubr.f32.gmra.mxu0 %v691
      %v828 = vpop.f32.mrf.mxu0
      %v829 = vadd.f32 %v651, %v828
      %v830 = vpop.f32.mrf.mxu0
      %831 = vmatprep.mubr.f32.mxu0 0.0
      %832 = vmatmul.mubr.f32.gmra.mxu0 %v694
      %v833 = vpop.f32.mrf.mxu0
      %v834 = vadd.f32 %v651, %v833
      %v835 = vpop.f32.mrf.mxu0
      %836 = vmatprep.mubr.f32.mxu0 0.0
      %837 = vmatmul.mubr.f32.gmra.mxu0 %v697
      %v838 = vpop.f32.mrf.mxu0
      %v839 = vadd.f32 %v651, %v838
      %v840 = vpop.f32.mrf.mxu0
      %841 = vmatprep.mubr.f32.mxu0 0.0
      %842 = vmatmul.mubr.f32.gmra.mxu0 %v700
      %v843 = vpop.f32.mrf.mxu0
      %v844 = vadd.f32 %v651, %v843
      %v845 = vpop.f32.mrf.mxu0
      %846 = vdwg.mxu0
      %847 = vst [vmem:[%s403] sm:$0xff] %v769
      %848 = vst [vmem:[%s403 + $0x8] sm:$0xff] %v774
      %849 = vst [vmem:[%s403 + $0x10] sm:$0xff] %v779
      %850 = vst [vmem:[%s403 + $0x18] sm:$0xff] %v784
      %851 = vst [vmem:[%s403 + $0x20] sm:$0xff] %v789
      %852 = vst [vmem:[%s403 + $0x28] sm:$0xff] %v794
      %853 = vst [vmem:[%s403 + $0x30] sm:$0xff] %v799
      %854 = vst [vmem:[%s403 + $0x38] sm:$0xff] %v804
      %855 = vst [vmem:[%s403 + $0x40] sm:$0xff] %v809
      %856 = vst [vmem:[%s403 + $0x48] sm:$0xff] %v814
      %857 = vst [vmem:[%s403 + $0x50] sm:$0xff] %v819
      %858 = vst [vmem:[%s403 + $0x58] sm:$0xff] %v824
      %859 = vst [vmem:[%s403 + $0x60] sm:$0xff] %v829
      %860 = vst [vmem:[%s403 + $0x68] sm:$0xff] %v834
      %861 = vst [vmem:[%s403 + $0x70] sm:$0xff] %v839
      %862 = vst [vmem:[%s403 + $0x78] sm:$0xff] %v844
      %p863 = scmp.eq.s32.totalorder %s27, 0
      // Predicated region
      $region57: #{forward.1} parent=55 // pred_check
        %p864 = pneg %p863
      $region58: #{forward.1} parent=55 // pred_check_branch
        %866 = sbr.rel (%p864) target = $region60
      $region59: #{forward.1} parent=55 // pred_region
        %vm867 = vcmask 253952
        %868 = vst.msk [vmem:[#allocation2] sm:$0x1] %vm867, 0.0
      $region60: #{forward.1} parent=55 // pred_fallthru
        _
      %v869 = vld [vmem:[#allocation2] sm:$0x1]
      %v870 = vsel %vm653, %v626, 0.0
      %v871 = vsel %vm653, %v627, 0.0
      %v872 = vadd.f32 %v870, %v871
      %v873 = vsel %vm653, %v628, 0.0
      %v874 = vadd.f32 %v872, %v873
      %v875 = vsel %vm653, %v629, 0.0
      %v876 = vadd.f32 %v874, %v875
      %v877 = vsel %vm653, %v630, 0.0
      %v878 = vadd.f32 %v876, %v877
      %v879 = vsel %vm653, %v631, 0.0
      %v880 = vadd.f32 %v878, %v879
      %v881 = vsel %vm653, %v632, 0.0
      %v882 = vadd.f32 %v880, %v881
      %v883 = vsel %vm653, %v633, 0.0
      %v884 = vadd.f32 %v882, %v883
      %v885 = vsel %vm653, %v634, 0.0
      %v886 = vadd.f32 %v884, %v885
      %v887 = vsel %vm653, %v635, 0.0
      %v888 = vadd.f32 %v886, %v887
      %v889 = vsel %vm653, %v636, 0.0
      %v890 = vadd.f32 %v888, %v889
      %v891 = vsel %vm653, %v637, 0.0
      %v892 = vadd.f32 %v890, %v891
      %v893 = vsel %vm653, %v638, 0.0
      %v894 = vadd.f32 %v892, %v893
      %v895 = vsel %vm653, %v639, 0.0
      %v896 = vadd.f32 %v894, %v895
      %v897 = vsel %vm653, %v640, 0.0
      %v898 = vadd.f32 %v896, %v897
      %v899 = vsel %vm653, %v641, 0.0
      %v900 = vadd.f32 %v898, %v899
      %v901 = vrot.slane %v900, 4
      %v902 = vadd.f32 %v900, %v901
      %v903 = vrot.slane %v902, 2
      %v904 = vadd.f32 %v902, %v903
      %v905 = vrot.slane %v904, 1
      %v906 = vadd.f32 %v904, %v905
      %v907 = vadd.f32 %v869, %v906
      %vm908 = vcmask 253952
      %909 = vst.msk [vmem:[#allocation2] sm:$0x1] %vm908, %v907
      %p910 = scmp.eq.s32.totalorder %s27, 1
      // Predicated region
      $region61: #{forward.1} parent=55 // pred_check
        %p911 = pneg %p910
      $region62: #{forward.1} parent=55 // pred_check_branch
        %913 = sbr.rel (%p911) target = $region64
      $region63: #{forward.1} parent=55 // pred_region
        %v914 = vld [vmem:[#allocation2] sm:$0x1]
        %v915 = vmul.f32 %v914, 0.00390625
        %v916 = vld [vmem:[%s5] sm:$0xff]
        %v917 = vld [vmem:[%s5 + $0x8] sm:$0xff]
        %v918 = vld [vmem:[%s5 + $0x10] sm:$0xff]
        %v919 = vld [vmem:[%s5 + $0x18] sm:$0xff]
        %v920 = vld [vmem:[%s6] sm:$0x1]
        %v922 = vsel %vm653, %v915, 0
        %924 = vmatprep.subr.mxu0 0.0
        %925 = vmatpush1.msra.mxu0 0.0
        %926 = vmatprep.subr.mxu0 0.0
        %927 = vmatpush1.msra.mxu0 0.0
        %928 = vmatprep.subr.mxu0 0.0
        %929 = vmatpush1.msra.mxu0 0.0
        %930 = vmatprep.subr.mxu0 0.0
        %931 = vmatpush1.msra.mxu0 0.0
        %932 = vmatprep.subr.mxu0 0.0
        %933 = vmatpush1.msra.mxu0 0.0
        %934 = vmatprep.subr.mxu0 0.0
        %935 = vmatpush1.msra.mxu0 0.0
        %936 = vmatprep.subr.mxu0 0.0
        %937 = vmatpush1.msra.mxu0 0.0
        %938 = vmatprep.subr.mxu0 0.0
        %939 = vmatpush1.msra.mxu0 0.0
        %940 = vmatprep.subr.mxu0 0.0
        %941 = vmatpush1.msra.mxu0 0.0
        %942 = vmatprep.subr.mxu0 0.0
        %943 = vmatpush1.msra.mxu0 0.0
        %944 = vmatprep.subr.mxu0 0.0
        %945 = vmatpush1.msra.mxu0 0.0
        %946 = vmatprep.subr.mxu0 0.0
        %947 = vmatpush1.msra.mxu0 0.0
        %948 = vmatprep.subr.mxu0 0.0
        %949 = vmatpush1.msra.mxu0 %v919
        %950 = vmatprep.subr.mxu0 0.0
        %951 = vmatpush1.msra.mxu0 %v918
        %952 = vmatprep.subr.mxu0 0.0
        %953 = vmatpush1.msra.mxu0 %v917
        %954 = vmatprep.subr.mxu0 0.0
        %955 = vmatpush1.msra.mxu0 %v916
        %956 = vmatprep.subr.mxu0 0.0
        %957 = vmatpush2.msra.mxu0 0.0
        %958 = vmatprep.subr.mxu0 0.0
        %959 = vmatpush2.msra.mxu0 0.0
        %960 = vmatprep.subr.mxu0 0.0
        %961 = vmatpush2.msra.mxu0 0.0
        %962 = vmatprep.subr.mxu0 0.0
        %963 = vmatpush2.msra.mxu0 0.0
        %964 = vmatprep.subr.mxu0 0.0
        %965 = vmatpush2.msra.mxu0 0.0
        %966 = vmatprep.subr.mxu0 0.0
        %967 = vmatpush2.msra.mxu0 0.0
        %968 = vmatprep.subr.mxu0 0.0
        %969 = vmatpush2.msra.mxu0 0.0
        %970 = vmatprep.subr.mxu0 0.0
        %971 = vmatpush2.msra.mxu0 0.0
        %972 = vmatprep.subr.mxu0 0.0
        %973 = vmatpush2.msra.mxu0 0.0
        %974 = vmatprep.subr.mxu0 0.0
        %975 = vmatpush2.msra.mxu0 0.0
        %976 = vmatprep.subr.mxu0 0.0
        %977 = vmatpush2.msra.mxu0 0.0
        %978 = vmatprep.subr.mxu0 0.0
        %979 = vmatpush2.msra.mxu0 0.0
        %980 = vmatprep.subr.mxu0 0.0
        %981 = vmatpush2.msra.mxu0 0.0
        %982 = vmatprep.subr.mxu0 0.0
        %983 = vmatpush2.msra.mxu0 0.0
        %984 = vmatprep.subr.mxu0 0.0
        %985 = vmatpush2.msra.mxu0 0.0
        %986 = vmatprep.subr.mxu0 0.0
        %987 = vmatpush2.msra.mxu0 0.0
        %988 = vmatprep.mubr.f32.mxu0 0.0
        %989 = vmatmul.mubr.f32.gmra.mxu0 %v922
        %v990 = vpop.f32.mrf.mxu0
        %v991 = vadd.f32 %v920, %v990
        %v992 = vpop.f32.mrf.mxu0
        %993 = vdwg.mxu0
        %v994 = vmax.f32 %v991, 0.0
        %v995 = vld [vmem:[%s7] sm:$0xff]
        %v996 = vld [vmem:[%s7 + $0x8] sm:$0xff]
        %v997 = vld [vmem:[%s7 + $0x10] sm:$0xff]
        %v998 = vld [vmem:[%s7 + $0x18] sm:$0xff]
        %v999 = vld [vmem:[%s8] sm:$0x1]
        %v1001 = vsel %vm653, %v994, 0
        %1003 = vmatprep.subr.mxu0 0.0
        %1004 = vmatpush1.msra.mxu0 0.0
        %1005 = vmatprep.subr.mxu0 0.0
        %1006 = vmatpush1.msra.mxu0 0.0
        %1007 = vmatprep.subr.mxu0 0.0
        %1008 = vmatpush1.msra.mxu0 0.0
        %1009 = vmatprep.subr.mxu0 0.0
        %1010 = vmatpush1.msra.mxu0 0.0
        %1011 = vmatprep.subr.mxu0 0.0
        %1012 = vmatpush1.msra.mxu0 0.0
        %1013 = vmatprep.subr.mxu0 0.0
        %1014 = vmatpush1.msra.mxu0 0.0
        %1015 = vmatprep.subr.mxu0 0.0
        %1016 = vmatpush1.msra.mxu0 0.0
        %1017 = vmatprep.subr.mxu0 0.0
        %1018 = vmatpush1.msra.mxu0 0.0
        %1019 = vmatprep.subr.mxu0 0.0
        %1020 = vmatpush1.msra.mxu0 0.0
        %1021 = vmatprep.subr.mxu0 0.0
        %1022 = vmatpush1.msra.mxu0 0.0
        %1023 = vmatprep.subr.mxu0 0.0
        %1024 = vmatpush1.msra.mxu0 0.0
        %1025 = vmatprep.subr.mxu0 0.0
        %1026 = vmatpush1.msra.mxu0 0.0
        %1027 = vmatprep.subr.mxu0 0.0
        %1028 = vmatpush1.msra.mxu0 %v998
        %1029 = vmatprep.subr.mxu0 0.0
        %1030 = vmatpush1.msra.mxu0 %v997
        %1031 = vmatprep.subr.mxu0 0.0
        %1032 = vmatpush1.msra.mxu0 %v996
        %1033 = vmatprep.subr.mxu0 0.0
        %1034 = vmatpush1.msra.mxu0 %v995
        %1035 = vmatprep.subr.mxu0 0.0
        %1036 = vmatpush2.msra.mxu0 0.0
        %1037 = vmatprep.subr.mxu0 0.0
        %1038 = vmatpush2.msra.mxu0 0.0
        %1039 = vmatprep.subr.mxu0 0.0
        %1040 = vmatpush2.msra.mxu0 0.0
        %1041 = vmatprep.subr.mxu0 0.0
        %1042 = vmatpush2.msra.mxu0 0.0
        %1043 = vmatprep.subr.mxu0 0.0
        %1044 = vmatpush2.msra.mxu0 0.0
        %1045 = vmatprep.subr.mxu0 0.0
        %1046 = vmatpush2.msra.mxu0 0.0
        %1047 = vmatprep.subr.mxu0 0.0
        %1048 = vmatpush2.msra.mxu0 0.0
        %1049 = vmatprep.subr.mxu0 0.0
        %1050 = vmatpush2.msra.mxu0 0.0
        %1051 = vmatprep.subr.mxu0 0.0
        %1052 = vmatpush2.msra.mxu0 0.0
        %1053 = vmatprep.subr.mxu0 0.0
        %1054 = vmatpush2.msra.mxu0 0.0
        %1055 = vmatprep.subr.mxu0 0.0
        %1056 = vmatpush2.msra.mxu0 0.0
        %1057 = vmatprep.subr.mxu0 0.0
        %1058 = vmatpush2.msra.mxu0 0.0
        %1059 = vmatprep.subr.mxu0 0.0
        %1060 = vmatpush2.msra.mxu0 0.0
        %1061 = vmatprep.subr.mxu0 0.0
        %1062 = vmatpush2.msra.mxu0 0.0
        %1063 = vmatprep.subr.mxu0 0.0
        %1064 = vmatpush2.msra.mxu0 0.0
        %1065 = vmatprep.subr.mxu0 0.0
        %1066 = vmatpush2.msra.mxu0 0.0
        %1067 = vmatprep.mubr.f32.mxu0 0.0
        %1068 = vmatmul.mubr.f32.gmra.mxu0 %v1001
        %v1069 = vpop.f32.mrf.mxu0
        %v1070 = vadd.f32 %v999, %v1069
        %v1071 = vpop.f32.mrf.mxu0
        %1072 = vdwg.mxu0
        %1073 = vst [vmem:[%s407] sm:$0x1] %v1070
      $region64: #{forward.1} parent=55 // pred_fallthru
        _
      %s1074 = smul.u32 16, %s27
      %p1075 = scmp.lt.s32.totalorder %s26, 1
      %s1076 = scalar_select %p1075, %s26, 1
      %p1077 = scmp.lt.s32.totalorder %s1074, 31
      %s1078 = scalar_select %p1077, %s1074, 31
      %s1079 = smul.addr %s1076, 32
      %s1080 = sadd.s32 %s1078, %s1079
      %s1081 = smul.addr %s1080, 8
      %s1082 = scalar_lea.vmem %s9, %s1081
      %p1083 = scmp.lt.s32.totalorder %s26, 1
      %s1084 = scalar_select %p1083, %s26, 1
      %s1085 = scalar_lea.vmem %s10, %s1084
      // Predicated region
      $region65: #{forward.1} parent=55 // pred_check
        %p1086 = pneg %p250
      $region66: #{forward.1} parent=55 // pred_check_branch
        %1088 = sbr.rel (%p1086) target = $region68
      $region67: #{forward.1} parent=55 // pred_region
        %s1089 = smul.u32 16, %s27
      $region68: #{forward.1} parent=55 // pred_fallthru
        _
      // Predicated region
      $region69: #{forward.1} parent=55 // pred_check
        %p1090 = pneg %p276
      $region70: #{forward.1} parent=55 // pred_check_branch
        %1092 = sbr.rel (%p1090) target = $region72
      $region71: #{forward.1} parent=55 // pred_region
        _
      $region72: #{forward.1} parent=55 // pred_fallthru
        _
    $region56: #{forward.1} parent=5 // pred_fallthru
      _
    %p1093 = scmp.le.s32.totalorder 2, %s17
    // Predicated region
    $region73: #{forward.1} parent=5 // pred_check
      %p1094 = pneg %p1093
    $region74: #{forward.1} parent=5 // pred_check_branch
      %1096 = sbr.rel (%p1094) target = $region76
    $region75: #{forward.1} parent=5 // pred_region
      %s1097 = ssub.s32 %s17, 2
      // Predicated region
      $region77: #{forward.1} parent=75 // pred_check
        %p1098 = pneg %p256
      $region78: #{forward.1} parent=75 // pred_check_branch
        %1100 = sbr.rel (%p1098) target = $region80
      $region79: #{forward.1} parent=75 // pred_region
        %s1101 = smul.u32 16, %s29
        %p1102 = scmp.lt.s32.totalorder %s28, 1
        %s1103 = scalar_select %p1102, %s28, 1
        %p1104 = scmp.lt.s32.totalorder %s1101, 31
        %s1105 = scalar_select %p1104, %s1101, 31
        %s1106 = smul.addr %s1103, 32
        %s1107 = sadd.s32 %s1105, %s1106
        %s1108 = smul.addr %s1107, 8
        %s1109 = scalar_lea.vmem %s9, %s1108
      $region80: #{forward.1} parent=75 // pred_fallthru
        _
      // Predicated region
      $region81: #{forward.1} parent=75 // pred_check
        %p1110 = pneg %p282
      $region82: #{forward.1} parent=75 // pred_check_branch
        %1112 = sbr.rel (%p1110) target = $region84
      $region83: #{forward.1} parent=75 // pred_region
        %p1113 = scmp.lt.s32.totalorder %s28, 1
        %s1114 = scalar_select %p1113, %s28, 1
        %s1115 = scalar_lea.vmem %s10, %s1114
      $region84: #{forward.1} parent=75 // pred_fallthru
        _
    $region76: #{forward.1} parent=5 // pred_fallthru
      _
  $region6: #{forward.1} parent=0 // loop_footer
    %s21 = sadd.s32 1, %s17
  $region7: #{forward.1} parent=0 // loop_footer_branch
    %16 = sbr.rel target = $region3
  $region8: #{forward.1} parent=0 // loop_exit
    _

</llo_original>
